<compile_context>
chip_gen: v7x
topology: tpu7x:2x2x1
jax: 0.10.0
libtpu: 0.0.40
codegen_flags: <defaults>
</compile_context>

<pallas_src>
import functools

import jax
import jax.numpy as jnp
from jax.experimental import pallas as pl
from jax.experimental.pallas import tpu as pltpu

HIDDEN = 32
IN_FEATS = 2
OUT_FEATS = 1
SCALE_MAX = 6.0        # self.max in F_MLP
MAX_TILE_N = 8192      # batch (lane) tile; multiple of 128, VMEM-safe on v5e


def _sigmoid1(x):
    # sigmoid(x) == 0.5 * tanh(0.5 * x) + 0.5  -> one EUP transcendental
    return 0.5 * jnp.tanh(0.5 * x) + 0.5


def _f_mlp_kernel(x_ref, w1_ref, b1_ref, w2_ref, b2_ref,
                  w3_ref, b3_ref, w4_ref, b4_ref, o_ref, *, matmul_dtype):
    # Batch-on-lanes layout: x is (2, T); activations are (32, T).
    x = x_ref[...]                                                   # (2, T)

    # ---- Layer 1 (K=2): VPU outer-product, no MXU pass -----------------
    w1 = w1_ref[...]                                                 # (32, 2)
    h = (w1[:, 0:1] * x[0:1, :]
         + w1[:, 1:2] * x[1:2, :]
         + b1_ref[...])                                              # (32, T)
    h = _sigmoid1(h)

    # ---- Layers 2 & 3: 32x32 MXU matmuls (weights stationary RHS-side
    #      operands stay resident via constant index_maps) ---------------
    h = jnp.dot(w2_ref[...], h.astype(matmul_dtype),
                preferred_element_type=jnp.float32) + b2_ref[...]
    h = _sigmoid1(h)                                                 # (32, T)

    h = jnp.dot(w3_ref[...], h.astype(matmul_dtype),
                preferred_element_type=jnp.float32) + b3_ref[...]
    h = _sigmoid1(h)                                                 # (32, T)

    # ---- Layer 4 (M=1): elementwise mul + sublane reduction (XLU),
    #      SCALE_MAX already folded into w4/b4 by the wrapper ------------
    out = jnp.sum(w4_ref[...] * h, axis=0, keepdims=True) + b4_ref[...]
    o_ref[...] = out.astype(o_ref.dtype)                             # (1, T)


def f_mlp_forward(uv, params, *, use_bf16_matmul=False):
    """uv: (N, 2) float32.  Returns (N, 1) float32 = 6 * MLP(uv)."""
    (w1, b1, w2, b2, w3, b3, w4, b4) = params   # w: (in, out), b: (1, out)
    n = uv.shape[0]
    assert uv.shape[1] == IN_FEATS

    # Tile choice: big enough to amortize grid-step overhead, small enough to
    # give >= 2 parallel grid steps (v7x megacore) whenever N allows.
    tile_n = min(MAX_TILE_N, max(128, pl.cdiv(pl.cdiv(n, 2), 128) * 128))
    n_pad = pl.cdiv(n, tile_n) * tile_n
    grid = (n_pad // tile_n,)

    # Batch-on-lanes input: (2, N_pad). Padded rows produce finite garbage
    # that is sliced off at the end.
    x_t = uv if n_pad == n else jnp.pad(uv, ((0, n_pad - n), (0, 0)))
    x_t = x_t.T.astype(jnp.float32)                                  # (2, n_pad)

    matmul_dtype = jnp.bfloat16 if use_bf16_matmul else jnp.float32

    # Weight / bias prep (all tiny, done once on host/XLA side):
    w1t = w1.T.astype(jnp.float32)                                   # (32, 2)
    w2t = w2.T.astype(matmul_dtype)                                  # (32, 32)
    w3t = w3.T.astype(matmul_dtype)                                  # (32, 32)
    w4c = (SCALE_MAX * w4).astype(jnp.float32)                       # (32, 1) column
    b1t = b1.T.astype(jnp.float32)                                   # (32, 1)
    b2t = b2.T.astype(jnp.float32)                                   # (32, 1)
    b3t = b3.T.astype(jnp.float32)                                   # (32, 1)
    b4t = (SCALE_MAX * b4).T.astype(jnp.float32)                     # (1, 1)

    def full_spec(shape):
        return pl.BlockSpec(shape, lambda i, _s=len(shape): (0,) * _s)

    kernel = functools.partial(_f_mlp_kernel, matmul_dtype=matmul_dtype)

    out = pl.pallas_call(
        kernel,
        out_shape=jax.ShapeDtypeStruct((OUT_FEATS, n_pad), jnp.float32),
        grid_spec=pltpu.PrefetchScalarGridSpec(
            num_scalar_prefetch=0,
            grid=grid,
            in_specs=[
                pl.BlockSpec((IN_FEATS, tile_n), lambda i: (0, i)),  # uv tile
                full_spec(w1t.shape), full_spec(b1t.shape),
                full_spec(w2t.shape), full_spec(b2t.shape),
                full_spec(w3t.shape), full_spec(b3t.shape),
                full_spec(w4c.shape), full_spec(b4t.shape),
            ],
            out_specs=pl.BlockSpec((OUT_FEATS, tile_n), lambda i: (0, i)),
        ),
        compiler_params=pltpu.CompilerParams(
            dimension_semantics=("parallel",)),
    )(x_t, w1t, b1t, w2t, b2t, w3t, b3t, w4c, b4t)

    return out.T[:n]                                                 # (N, 1)


def init_params(key):
    """Deterministic synthetic parameters matching BuildMLP(2,[32,32,32,1])."""
    ks = jax.random.split(key, 8)

    def lin(kw, kb, fan_in, fan_out):
        # PyTorch nn.Linear default: U(-1/sqrt(fan_in), 1/sqrt(fan_in))
        bound = 1.0 / jnp.sqrt(fan_in)
        w = jax.random.uniform(kw, (fan_in, fan_out), jnp.float32, -bound, bound)
        b = jax.random.uniform(kb, (1, fan_out), jnp.float32, -bound, bound)
        return w, b

    w1, b1 = lin(ks[0], ks[1], IN_FEATS, HIDDEN)
    w2, b2 = lin(ks[2], ks[3], HIDDEN, HIDDEN)
    w3, b3 = lin(ks[4], ks[5], HIDDEN, HIDDEN)
    w4, b4 = lin(ks[6], ks[7], HIDDEN, OUT_FEATS)
    return (w1, b1, w2, b2, w3, b3, w4, b4)


def f_mlp_reference(uv, params):
    (w1, b1, w2, b2, w3, b3, w4, b4) = params
    h = jax.nn.sigmoid(uv @ w1 + b1)
    h = jax.nn.sigmoid(h @ w2 + b2)
    h = jax.nn.sigmoid(h @ w3 + b3)
    return SCALE_MAX * (h @ w4 + b4)


if __name__ == "__main__":
    key = jax.random.PRNGKey(0)
    k_x, k_p = jax.random.split(key)

    N = 256  # small batch of (u, v) samples; input range matches self.min/max
    uv = jax.random.uniform(k_x, (N, IN_FEATS), jnp.float32, -2.0, 6.0)
    params = init_params(k_p)

    ref = f_mlp_reference(uv, params)

    # Exact f32 path (default).
    out_f32 = jax.block_until_ready(f_mlp_forward(uv, params))
    assert out_f32.shape == (N, 1)
    assert jnp.allclose(out_f32, ref, atol=1e-4, rtol=1e-4), "f32 mismatch"

    # bf16-operand MXU path (faster; ~1e-3 expected drift).
    out_bf16 = jax.block_until_ready(
        f_mlp_forward(uv, params, use_bf16_matmul=True))
    assert out_bf16.shape == (N, 1)
    assert jnp.allclose(out_bf16, ref, atol=1e-2, rtol=1e-2), "bf16 mismatch"

    print("KERNEL_OK")
</pallas_src>

<mosaic_0001>
module attributes {stable_mosaic.version = 11 : i64} {
  func.func @_f_mlp_kernel(%arg0: i32, %arg1: memref<2x128xf32, #tpu.memory_space<vmem>>, %arg2: memref<32x2xf32, #tpu.memory_space<vmem>>, %arg3: memref<32x1xf32, #tpu.memory_space<vmem>>, %arg4: memref<32x32xf32, #tpu.memory_space<vmem>>, %arg5: memref<32x1xf32, #tpu.memory_space<vmem>>, %arg6: memref<32x32xf32, #tpu.memory_space<vmem>>, %arg7: memref<32x1xf32, #tpu.memory_space<vmem>>, %arg8: memref<32x1xf32, #tpu.memory_space<vmem>>, %arg9: memref<1x1xf32, #tpu.memory_space<vmem>>, %arg10: memref<1x128xf32, #tpu.memory_space<vmem>>) attributes {dimension_semantics = [#tpu.dimension_semantics<parallel>], iteration_bounds = array<i64: 2>, scalar_prefetch = 0 : i64, scratch_operands = 0 : i64, tpu.core_type = #tpu.core_type<tc>, window_params = [{transform_indices = @transform_0, window_bounds = array<i64: 2, 128>}, {pipeline_mode = #tpu.pipeline_mode<synchronous>, transform_indices = @transform_1, window_bounds = array<i64: 32, 2>}, {pipeline_mode = #tpu.pipeline_mode<synchronous>, transform_indices = @transform_2, window_bounds = array<i64: 32, 1>}, {pipeline_mode = #tpu.pipeline_mode<synchronous>, transform_indices = @transform_3, window_bounds = array<i64: 32, 32>}, {pipeline_mode = #tpu.pipeline_mode<synchronous>, transform_indices = @transform_4, window_bounds = array<i64: 32, 1>}, {pipeline_mode = #tpu.pipeline_mode<synchronous>, transform_indices = @transform_5, window_bounds = array<i64: 32, 32>}, {pipeline_mode = #tpu.pipeline_mode<synchronous>, transform_indices = @transform_6, window_bounds = array<i64: 32, 1>}, {pipeline_mode = #tpu.pipeline_mode<synchronous>, transform_indices = @transform_7, window_bounds = array<i64: 32, 1>}, {pipeline_mode = #tpu.pipeline_mode<synchronous>, transform_indices = @transform_8, window_bounds = array<i64: 1, 1>}, {transform_indices = @transform_9, window_bounds = array<i64: 1, 128>}]} {
    %c0 = arith.constant 0 : index
    %c0_0 = arith.constant 0 : index
    %0 = vector.load %arg1[%c0, %c0_0] : memref<2x128xf32, #tpu.memory_space<vmem>>, vector<2x128xf32>
    %c0_1 = arith.constant 0 : index
    %c0_2 = arith.constant 0 : index
    %1 = vector.load %arg2[%c0_1, %c0_2] : memref<32x2xf32, #tpu.memory_space<vmem>>, vector<32x2xf32>
    %2 = vector.extract_strided_slice %1 {offsets = [0, 0], sizes = [32, 1], strides = [1, 1]} : vector<32x2xf32> to vector<32x1xf32>
    %3 = vector.extract_strided_slice %0 {offsets = [0, 0], sizes = [1, 128], strides = [1, 1]} : vector<2x128xf32> to vector<1x128xf32>
    %4 = vector.broadcast %2 : vector<32x1xf32> to vector<32x128xf32>
    %5 = vector.broadcast %3 : vector<1x128xf32> to vector<32x128xf32>
    %6 = arith.mulf %4, %5 : vector<32x128xf32>
    %7 = vector.extract_strided_slice %1 {offsets = [0, 1], sizes = [32, 1], strides = [1, 1]} : vector<32x2xf32> to vector<32x1xf32>
    %8 = vector.extract_strided_slice %0 {offsets = [1, 0], sizes = [1, 128], strides = [1, 1]} : vector<2x128xf32> to vector<1x128xf32>
    %9 = vector.broadcast %7 : vector<32x1xf32> to vector<32x128xf32>
    %10 = vector.broadcast %8 : vector<1x128xf32> to vector<32x128xf32>
    %11 = arith.mulf %9, %10 : vector<32x128xf32>
    %12 = arith.addf %6, %11 : vector<32x128xf32>
    %c0_3 = arith.constant 0 : index
    %c0_4 = arith.constant 0 : index
    %13 = vector.load %arg3[%c0_3, %c0_4] : memref<32x1xf32, #tpu.memory_space<vmem>>, vector<32x1xf32>
    %14 = vector.broadcast %13 : vector<32x1xf32> to vector<32x128xf32>
    %15 = arith.addf %12, %14 : vector<32x128xf32>
    %cst = arith.constant 5.000000e-01 : f32
    %16 = vector.broadcast %cst : f32 to vector<32x128xf32>
    %17 = arith.mulf %16, %15 : vector<32x128xf32>
    %18 = math.tanh %17 : vector<32x128xf32>
    %cst_5 = arith.constant 5.000000e-01 : f32
    %19 = vector.broadcast %cst_5 : f32 to vector<32x128xf32>
    %20 = arith.mulf %19, %18 : vector<32x128xf32>
    %cst_6 = arith.constant 5.000000e-01 : f32
    %21 = vector.broadcast %cst_6 : f32 to vector<32x128xf32>
    %22 = arith.addf %20, %21 : vector<32x128xf32>
    %c0_7 = arith.constant 0 : index
    %c0_8 = arith.constant 0 : index
    %23 = vector.load %arg4[%c0_7, %c0_8] : memref<32x32xf32, #tpu.memory_space<vmem>>, vector<32x32xf32>
    %cst_9 = arith.constant dense<0.000000e+00> : vector<32x128xf32>
    %24 = tpu.matmul %23, %22, %cst_9 {dimension_numbers = #tpu.dot_dimension_numbers<[1], [0], [0], [1], [0, 0, 1, 1], [], []>} : vector<32x32xf32>, vector<32x128xf32>, vector<32x128xf32> -> vector<32x128xf32>
    %c0_10 = arith.constant 0 : index
    %c0_11 = arith.constant 0 : index
    %25 = vector.load %arg5[%c0_10, %c0_11] : memref<32x1xf32, #tpu.memory_space<vmem>>, vector<32x1xf32>
    %26 = vector.broadcast %25 : vector<32x1xf32> to vector<32x128xf32>
    %27 = arith.addf %24, %26 : vector<32x128xf32>
    %cst_12 = arith.constant 5.000000e-01 : f32
    %28 = vector.broadcast %cst_12 : f32 to vector<32x128xf32>
    %29 = arith.mulf %28, %27 : vector<32x128xf32>
    %30 = math.tanh %29 : vector<32x128xf32>
    %cst_13 = arith.constant 5.000000e-01 : f32
    %31 = vector.broadcast %cst_13 : f32 to vector<32x128xf32>
    %32 = arith.mulf %31, %30 : vector<32x128xf32>
    %cst_14 = arith.constant 5.000000e-01 : f32
    %33 = vector.broadcast %cst_14 : f32 to vector<32x128xf32>
    %34 = arith.addf %32, %33 : vector<32x128xf32>
    %c0_15 = arith.constant 0 : index
    %c0_16 = arith.constant 0 : index
    %35 = vector.load %arg6[%c0_15, %c0_16] : memref<32x32xf32, #tpu.memory_space<vmem>>, vector<32x32xf32>
    %cst_17 = arith.constant dense<0.000000e+00> : vector<32x128xf32>
    %36 = tpu.matmul %35, %34, %cst_17 {dimension_numbers = #tpu.dot_dimension_numbers<[1], [0], [0], [1], [0, 0, 1, 1], [], []>} : vector<32x32xf32>, vector<32x128xf32>, vector<32x128xf32> -> vector<32x128xf32>
    %c0_18 = arith.constant 0 : index
    %c0_19 = arith.constant 0 : index
    %37 = vector.load %arg7[%c0_18, %c0_19] : memref<32x1xf32, #tpu.memory_space<vmem>>, vector<32x1xf32>
    %38 = vector.broadcast %37 : vector<32x1xf32> to vector<32x128xf32>
    %39 = arith.addf %36, %38 : vector<32x128xf32>
    %cst_20 = arith.constant 5.000000e-01 : f32
    %40 = vector.broadcast %cst_20 : f32 to vector<32x128xf32>
    %41 = arith.mulf %40, %39 : vector<32x128xf32>
    %42 = math.tanh %41 : vector<32x128xf32>
    %cst_21 = arith.constant 5.000000e-01 : f32
    %43 = vector.broadcast %cst_21 : f32 to vector<32x128xf32>
    %44 = arith.mulf %43, %42 : vector<32x128xf32>
    %cst_22 = arith.constant 5.000000e-01 : f32
    %45 = vector.broadcast %cst_22 : f32 to vector<32x128xf32>
    %46 = arith.addf %44, %45 : vector<32x128xf32>
    %c0_23 = arith.constant 0 : index
    %c0_24 = arith.constant 0 : index
    %47 = vector.load %arg8[%c0_23, %c0_24] : memref<32x1xf32, #tpu.memory_space<vmem>>, vector<32x1xf32>
    %48 = vector.broadcast %47 : vector<32x1xf32> to vector<32x128xf32>
    %49 = arith.mulf %48, %46 : vector<32x128xf32>
    %cst_25 = arith.constant dense<0.000000e+00> : vector<128xf32>
    %50 = vector.multi_reduction <add>, %49, %cst_25 [0] : vector<32x128xf32> to vector<128xf32>
    %51 = vector.shape_cast %50 : vector<128xf32> to vector<1x128xf32>
    %c0_26 = arith.constant 0 : index
    %c0_27 = arith.constant 0 : index
    %52 = vector.load %arg9[%c0_26, %c0_27] : memref<1x1xf32, #tpu.memory_space<vmem>>, vector<1x1xf32>
    %53 = vector.broadcast %52 : vector<1x1xf32> to vector<1x128xf32>
    %54 = arith.addf %51, %53 : vector<1x128xf32>
    %c0_28 = arith.constant 0 : index
    %c0_29 = arith.constant 0 : index
    %55 = vector.load %arg10[%c0_28, %c0_29] : memref<1x128xf32, #tpu.memory_space<vmem>>, vector<1x128xf32>
    tpu.vector_store %arg10[%c0_28, %c0_29], %54 {strides = array<i32>} : memref<1x128xf32, #tpu.memory_space<vmem>>, vector<1x128xf32>,
    return
  }
  func.func @transform_0(%arg0: i32) -> (i32, i32) {
    %c0_i32 = arith.constant 0 : i32
    %c0_i32_0 = arith.constant 0 : i32
    return %c0_i32, %arg0 : i32, i32
  }
  func.func @transform_1(%arg0: i32) -> (i32, i32) {
    %c0_i32 = arith.constant 0 : i32
    %c0_i32_0 = arith.constant 0 : i32
    %c0_i32_1 = arith.constant 0 : i32
    return %c0_i32, %c0_i32_0 : i32, i32
  }
  func.func @transform_2(%arg0: i32) -> (i32, i32) {
    %c0_i32 = arith.constant 0 : i32
    %c0_i32_0 = arith.constant 0 : i32
    %c0_i32_1 = arith.constant 0 : i32
    return %c0_i32, %c0_i32_0 : i32, i32
  }
  func.func @transform_3(%arg0: i32) -> (i32, i32) {
    %c0_i32 = arith.constant 0 : i32
    %c0_i32_0 = arith.constant 0 : i32
    %c0_i32_1 = arith.constant 0 : i32
    return %c0_i32, %c0_i32_0 : i32, i32
  }
  func.func @transform_4(%arg0: i32) -> (i32, i32) {
    %c0_i32 = arith.constant 0 : i32
    %c0_i32_0 = arith.constant 0 : i32
    %c0_i32_1 = arith.constant 0 : i32
    return %c0_i32, %c0_i32_0 : i32, i32
  }
  func.func @transform_5(%arg0: i32) -> (i32, i32) {
    %c0_i32 = arith.constant 0 : i32
    %c0_i32_0 = arith.constant 0 : i32
    %c0_i32_1 = arith.constant 0 : i32
    return %c0_i32, %c0_i32_0 : i32, i32
  }
  func.func @transform_6(%arg0: i32) -> (i32, i32) {
    %c0_i32 = arith.constant 0 : i32
    %c0_i32_0 = arith.constant 0 : i32
    %c0_i32_1 = arith.constant 0 : i32
    return %c0_i32, %c0_i32_0 : i32, i32
  }
  func.func @transform_7(%arg0: i32) -> (i32, i32) {
    %c0_i32 = arith.constant 0 : i32
    %c0_i32_0 = arith.constant 0 : i32
    %c0_i32_1 = arith.constant 0 : i32
    return %c0_i32, %c0_i32_0 : i32, i32
  }
  func.func @transform_8(%arg0: i32) -> (i32, i32) {
    %c0_i32 = arith.constant 0 : i32
    %c0_i32_0 = arith.constant 0 : i32
    %c0_i32_1 = arith.constant 0 : i32
    return %c0_i32, %c0_i32_0 : i32, i32
  }
  func.func @transform_9(%arg0: i32) -> (i32, i32) {
    %c0_i32 = arith.constant 0 : i32
    %c0_i32_0 = arith.constant 0 : i32
    return %c0_i32, %arg0 : i32, i32
  }
}

</mosaic_0001>

<llo_original>
// kernel: tpu_custom_call.1
$region0: #{tpu_custom_call.1}
  #allocation0 [shape = 'u32[]', space=smem, size = 0x4, offset = 0x4, fixed_abs, tag = 'smem constant byte address 0x4 - core index']
  #allocation1 [shape = 'u32[144,128]{1,0:T(1,128)}', space=vmem, size = 0x12000, scoped, tag = 'internal scratch']
  #allocation2 [shape = 'f32[1,1]{1,0:T(1,128)S(1)}', space=vmem, size = 0x200, scoped, tag = 'scoped memory for tpu_custom_call.1']
  %s0 = inlined_call_operand.vmem [shape: f32[2,256], index: 0, kind: input, shape index: {}]
  %s1 = inlined_call_operand.vmem [shape: f32[32,2], index: 1, kind: input, shape index: {}]
  %s2 = inlined_call_operand.vmem [shape: f32[32,1], index: 2, kind: input, shape index: {}]
  %s3 = inlined_call_operand.vmem [shape: f32[32,32], index: 3, kind: input, shape index: {}]
  %s4 = inlined_call_operand.vmem [shape: f32[32,1], index: 4, kind: input, shape index: {}]
  %s5 = inlined_call_operand.vmem [shape: f32[32,32], index: 5, kind: input, shape index: {}]
  %s6 = inlined_call_operand.vmem [shape: f32[32,1], index: 6, kind: input, shape index: {}]
  %s7 = inlined_call_operand.vmem [shape: f32[32,1], index: 7, kind: input, shape index: {}]
  %s8 = inlined_call_operand.<no memory space> [shape: f32[1,1], index: 8, kind: input, shape index: {}]
  %s9 = inlined_call_operand.hbm [shape: f32[1,256], index: 9, kind: output, shape index: {}]
  %s10 = sld [smem:[#allocation0]]
  $region69: #{tpu_custom_call.1} parent=0
    _
  %s12 = ssub.s32 1, %s10
  %s13 = scalar_select 0, %s12, %s10
  %v14 = vstv %s8
  %15 = vst [vmem:[#allocation2] sm:$0x1] %v14
  $region1: #{tpu_custom_call.1} parent=0
    #allocation3 [shape = 'u8[1024]{0}', space=vmem, size = 0x400, scoped, tag = 'output window, operand 0']
    #allocation4 [shape = 's32[2]{0}', space=sflag, size = 0x8, scoped, tag = 'scoped memory for tpu_custom_call.1']
    %16 = vsyncpa [#allocation4], 0
    %s17 = scalar_lea.sflag [#allocation4], 1
    %18 = vsyncpa %s17, 0
    loop: start=0, step=1, limit=4
    $region2: #{tpu_custom_call.1} parent=1 // loop_pre_header
      _
    $region3: #{tpu_custom_call.1} parent=1 // loop_header
      %s20 = sphi 0, %s24
      %p21 = scmp.ge.s32.totalorder %s20, 4
      %s30 = sphi 0, %s32
      %s33 = sphi 0, %s30
      %s34 = sphi 0, %s33
      %s50 = sphi 0, %s34
      %s54 = sphi 0, %s54
      %s56 = sphi 0, %s54
      %s57 = sphi 0, %s56
      %s71 = sphi 0, %s57
      %s75 = sphi 0, %s75
      %s77 = sphi 0, %s75
      %s78 = sphi 0, %s77
      %s92 = sphi 0, %s78
      %s96 = sphi 0, %s96
      %s98 = sphi 0, %s96
      %s99 = sphi 0, %s98
      %s113 = sphi 0, %s99
      %s117 = sphi 0, %s117
      %s119 = sphi 0, %s117
      %s120 = sphi 0, %s119
      %s134 = sphi 0, %s120
      %s138 = sphi 0, %s138
      %s140 = sphi 0, %s138
      %s141 = sphi 0, %s140
      %s155 = sphi 0, %s141
      %s159 = sphi 0, %s159
      %s161 = sphi 0, %s159
      %s162 = sphi 0, %s161
      %s176 = sphi 0, %s162
      %s180 = sphi 0, %s180
      %s182 = sphi 0, %s180
      %s183 = sphi 0, %s182
      %s197 = sphi 0, %s183
      %s201 = sphi 0, %s201
      %s203 = sphi 0, %s201
      %s204 = sphi 0, %s203
      %s218 = sphi 0, %s204
      %s224 = sphi 0, %s226
      %s227 = sphi 0, %s224
      %s228 = sphi 0, %s227
      %s244 = sphi 0, %s228
    $region4: #{tpu_custom_call.1} parent=1 // loop_header_branch
      %23 = sbr.rel (%p21) target = $region8
    $region5: #{tpu_custom_call.1} parent=1 // loop_body
      %s25 = ssub.s32 %s20, 1
      %s26 = ssub.s32 %s20, 2
      %s27 = sadd.s32 %s20, 1
      %s28 = ssub.s32 %s20, %s27
      %p29 = scmp.eq.s32.totalorder %s28, 0
      %s31 = sadd.s32 %s30, 1
      %s32 = scalar_select %p29, %s30, %s31
      %p35 = pneg %p29
      %p36 = scmp.eq.s32.totalorder %s20, 1
      %p37 = por %p35, %p36
      %p38 = scmp.ne.s32.totalorder %s30, %s33
      %p39 = scmp.eq.s32.totalorder %s20, 0
      %p40 = por %p38, %p39
      %p41 = scmp.ne.s32.totalorder %s30, %s33
      %p42 = scmp.eq.s32.totalorder %s25, 1
      %p43 = por %p41, %p42
      %p44 = scmp.ne.s32.totalorder %s33, %s34
      %p45 = scmp.eq.s32.totalorder %s25, 0
      %p46 = por %p44, %p45
      %p47 = scmp.ne.s32.totalorder %s33, %s34
      %p48 = scmp.eq.s32.totalorder %s26, 1
      %p49 = por %p47, %p48
      %p51 = scmp.ne.s32.totalorder %s34, %s50
      %p52 = scmp.eq.s32.totalorder %s26, 0
      %p53 = por %p51, %p52
      %s55 = sadd.s32 %s54, 1
      %p58 = scmp.eq.s32.totalorder %s20, 1
      %p59 = scmp.ne.s32.totalorder %s54, %s56
      %p60 = scmp.eq.s32.totalorder %s20, 0
      %p61 = por %p59, %p60
      %p62 = scmp.ne.s32.totalorder %s54, %s56
      %p63 = scmp.eq.s32.totalorder %s25, 1
      %p64 = por %p62, %p63
      %p65 = scmp.ne.s32.totalorder %s56, %s57
      %p66 = scmp.eq.s32.totalorder %s25, 0
      %p67 = por %p65, %p66
      %p68 = scmp.ne.s32.totalorder %s56, %s57
      %p69 = scmp.eq.s32.totalorder %s26, 1
      %p70 = por %p68, %p69
      %p72 = scmp.ne.s32.totalorder %s57, %s71
      %p73 = scmp.eq.s32.totalorder %s26, 0
      %p74 = por %p72, %p73
      %s76 = sadd.s32 %s75, 1
      %p79 = scmp.eq.s32.totalorder %s20, 1
      %p80 = scmp.ne.s32.totalorder %s75, %s77
      %p81 = scmp.eq.s32.totalorder %s20, 0
      %p82 = por %p80, %p81
      %p83 = scmp.ne.s32.totalorder %s75, %s77
      %p84 = scmp.eq.s32.totalorder %s25, 1
      %p85 = por %p83, %p84
      %p86 = scmp.ne.s32.totalorder %s77, %s78
      %p87 = scmp.eq.s32.totalorder %s25, 0
      %p88 = por %p86, %p87
      %p89 = scmp.ne.s32.totalorder %s77, %s78
      %p90 = scmp.eq.s32.totalorder %s26, 1
      %p91 = por %p89, %p90
      %p93 = scmp.ne.s32.totalorder %s78, %s92
      %p94 = scmp.eq.s32.totalorder %s26, 0
      %p95 = por %p93, %p94
      %s97 = sadd.s32 %s96, 1
      %p100 = scmp.eq.s32.totalorder %s20, 1
      %p101 = scmp.ne.s32.totalorder %s96, %s98
      %p102 = scmp.eq.s32.totalorder %s20, 0
      %p103 = por %p101, %p102
      %p104 = scmp.ne.s32.totalorder %s96, %s98
      %p105 = scmp.eq.s32.totalorder %s25, 1
      %p106 = por %p104, %p105
      %p107 = scmp.ne.s32.totalorder %s98, %s99
      %p108 = scmp.eq.s32.totalorder %s25, 0
      %p109 = por %p107, %p108
      %p110 = scmp.ne.s32.totalorder %s98, %s99
      %p111 = scmp.eq.s32.totalorder %s26, 1
      %p112 = por %p110, %p111
      %p114 = scmp.ne.s32.totalorder %s99, %s113
      %p115 = scmp.eq.s32.totalorder %s26, 0
      %p116 = por %p114, %p115
      %s118 = sadd.s32 %s117, 1
      %p121 = scmp.eq.s32.totalorder %s20, 1
      %p122 = scmp.ne.s32.totalorder %s117, %s119
      %p123 = scmp.eq.s32.totalorder %s20, 0
      %p124 = por %p122, %p123
      %p125 = scmp.ne.s32.totalorder %s117, %s119
      %p126 = scmp.eq.s32.totalorder %s25, 1
      %p127 = por %p125, %p126
      %p128 = scmp.ne.s32.totalorder %s119, %s120
      %p129 = scmp.eq.s32.totalorder %s25, 0
      %p130 = por %p128, %p129
      %p131 = scmp.ne.s32.totalorder %s119, %s120
      %p132 = scmp.eq.s32.totalorder %s26, 1
      %p133 = por %p131, %p132
      %p135 = scmp.ne.s32.totalorder %s120, %s134
      %p136 = scmp.eq.s32.totalorder %s26, 0
      %p137 = por %p135, %p136
      %s139 = sadd.s32 %s138, 1
      %p142 = scmp.eq.s32.totalorder %s20, 1
      %p143 = scmp.ne.s32.totalorder %s138, %s140
      %p144 = scmp.eq.s32.totalorder %s20, 0
      %p145 = por %p143, %p144
      %p146 = scmp.ne.s32.totalorder %s138, %s140
      %p147 = scmp.eq.s32.totalorder %s25, 1
      %p148 = por %p146, %p147
      %p149 = scmp.ne.s32.totalorder %s140, %s141
      %p150 = scmp.eq.s32.totalorder %s25, 0
      %p151 = por %p149, %p150
      %p152 = scmp.ne.s32.totalorder %s140, %s141
      %p153 = scmp.eq.s32.totalorder %s26, 1
      %p154 = por %p152, %p153
      %p156 = scmp.ne.s32.totalorder %s141, %s155
      %p157 = scmp.eq.s32.totalorder %s26, 0
      %p158 = por %p156, %p157
      %s160 = sadd.s32 %s159, 1
      %p163 = scmp.eq.s32.totalorder %s20, 1
      %p164 = scmp.ne.s32.totalorder %s159, %s161
      %p165 = scmp.eq.s32.totalorder %s20, 0
      %p166 = por %p164, %p165
      %p167 = scmp.ne.s32.totalorder %s159, %s161
      %p168 = scmp.eq.s32.totalorder %s25, 1
      %p169 = por %p167, %p168
      %p170 = scmp.ne.s32.totalorder %s161, %s162
      %p171 = scmp.eq.s32.totalorder %s25, 0
      %p172 = por %p170, %p171
      %p173 = scmp.ne.s32.totalorder %s161, %s162
      %p174 = scmp.eq.s32.totalorder %s26, 1
      %p175 = por %p173, %p174
      %p177 = scmp.ne.s32.totalorder %s162, %s176
      %p178 = scmp.eq.s32.totalorder %s26, 0
      %p179 = por %p177, %p178
      %s181 = sadd.s32 %s180, 1
      %p184 = scmp.eq.s32.totalorder %s20, 1
      %p185 = scmp.ne.s32.totalorder %s180, %s182
      %p186 = scmp.eq.s32.totalorder %s20, 0
      %p187 = por %p185, %p186
      %p188 = scmp.ne.s32.totalorder %s180, %s182
      %p189 = scmp.eq.s32.totalorder %s25, 1
      %p190 = por %p188, %p189
      %p191 = scmp.ne.s32.totalorder %s182, %s183
      %p192 = scmp.eq.s32.totalorder %s25, 0
      %p193 = por %p191, %p192
      %p194 = scmp.ne.s32.totalorder %s182, %s183
      %p195 = scmp.eq.s32.totalorder %s26, 1
      %p196 = por %p194, %p195
      %p198 = scmp.ne.s32.totalorder %s183, %s197
      %p199 = scmp.eq.s32.totalorder %s26, 0
      %p200 = por %p198, %p199
      %s202 = sadd.s32 %s201, 1
      %p205 = scmp.eq.s32.totalorder %s20, 1
      %p206 = scmp.ne.s32.totalorder %s201, %s203
      %p207 = scmp.eq.s32.totalorder %s20, 0
      %p208 = por %p206, %p207
      %p209 = scmp.ne.s32.totalorder %s201, %s203
      %p210 = scmp.eq.s32.totalorder %s25, 1
      %p211 = por %p209, %p210
      %p212 = scmp.ne.s32.totalorder %s203, %s204
      %p213 = scmp.eq.s32.totalorder %s25, 0
      %p214 = por %p212, %p213
      %p215 = scmp.ne.s32.totalorder %s203, %s204
      %p216 = scmp.eq.s32.totalorder %s26, 1
      %p217 = por %p215, %p216
      %p219 = scmp.ne.s32.totalorder %s204, %s218
      %p220 = scmp.eq.s32.totalorder %s26, 0
      %p221 = por %p219, %p220
      %s222 = ssub.s32 %s20, %s27
      %p223 = scmp.eq.s32.totalorder %s222, 0
      %s225 = sadd.s32 %s224, 1
      %s226 = scalar_select %p223, %s224, %s225
      %p229 = pneg %p223
      %p230 = scmp.eq.s32.totalorder %s20, 1
      %p231 = por %p229, %p230
      %p232 = scmp.ne.s32.totalorder %s224, %s227
      %p233 = scmp.eq.s32.totalorder %s20, 0
      %p234 = por %p232, %p233
      %p235 = scmp.ne.s32.totalorder %s224, %s227
      %p236 = scmp.eq.s32.totalorder %s25, 1
      %p237 = por %p235, %p236
      %p238 = scmp.ne.s32.totalorder %s227, %s228
      %p239 = scmp.eq.s32.totalorder %s25, 0
      %p240 = por %p238, %p239
      %p241 = scmp.ne.s32.totalorder %s227, %s228
      %p242 = scmp.eq.s32.totalorder %s26, 1
      %p243 = por %p241, %p242
      %p245 = scmp.ne.s32.totalorder %s228, %s244
      %p246 = scmp.eq.s32.totalorder %s26, 0
      %p247 = por %p245, %p246
      %p248 = scmp.le.s32.totalorder 1, %s20
      %p249 = scmp.lt.s32.totalorder %s20, 3
      %p250 = pnand %p248, %p249
      %p251 = pneg %p250
      // Predicated region
      $region9: #{tpu_custom_call.1} parent=5 // pred_check
        _
      $region10: #{tpu_custom_call.1} parent=5 // pred_check_branch
        %253 = sbr.rel (%p250) target = $region12
      $region11: #{tpu_custom_call.1} parent=5 // pred_region
        %s254 = ssub.s32 %s20, 1
        // Predicated region
        $region13: #{tpu_custom_call.1} parent=11 // pred_check
          %p255 = pneg %p67
        $region14: #{tpu_custom_call.1} parent=11 // pred_check_branch
          %257 = sbr.rel (%p255) target = $region16
        $region15: #{tpu_custom_call.1} parent=11 // pred_region
          _
        $region16: #{tpu_custom_call.1} parent=11 // pred_fallthru
          _
        // Predicated region
        $region17: #{tpu_custom_call.1} parent=11 // pred_check
          %p258 = pneg %p88
        $region18: #{tpu_custom_call.1} parent=11 // pred_check_branch
          %260 = sbr.rel (%p258) target = $region20
        $region19: #{tpu_custom_call.1} parent=11 // pred_region
          _
        $region20: #{tpu_custom_call.1} parent=11 // pred_fallthru
          _
        // Predicated region
        $region21: #{tpu_custom_call.1} parent=11 // pred_check
          %p261 = pneg %p109
        $region22: #{tpu_custom_call.1} parent=11 // pred_check_branch
          %263 = sbr.rel (%p261) target = $region24
        $region23: #{tpu_custom_call.1} parent=11 // pred_region
          _
        $region24: #{tpu_custom_call.1} parent=11 // pred_fallthru
          _
        // Predicated region
        $region25: #{tpu_custom_call.1} parent=11 // pred_check
          %p264 = pneg %p130
        $region26: #{tpu_custom_call.1} parent=11 // pred_check_branch
          %266 = sbr.rel (%p264) target = $region28
        $region27: #{tpu_custom_call.1} parent=11 // pred_region
          _
        $region28: #{tpu_custom_call.1} parent=11 // pred_fallthru
          _
        // Predicated region
        $region29: #{tpu_custom_call.1} parent=11 // pred_check
          %p267 = pneg %p151
        $region30: #{tpu_custom_call.1} parent=11 // pred_check_branch
          %269 = sbr.rel (%p267) target = $region32
        $region31: #{tpu_custom_call.1} parent=11 // pred_region
          _
        $region32: #{tpu_custom_call.1} parent=11 // pred_fallthru
          _
        // Predicated region
        $region33: #{tpu_custom_call.1} parent=11 // pred_check
          %p270 = pneg %p172
        $region34: #{tpu_custom_call.1} parent=11 // pred_check_branch
          %272 = sbr.rel (%p270) target = $region36
        $region35: #{tpu_custom_call.1} parent=11 // pred_region
          _
        $region36: #{tpu_custom_call.1} parent=11 // pred_fallthru
          _
        // Predicated region
        $region37: #{tpu_custom_call.1} parent=11 // pred_check
          %p273 = pneg %p193
        $region38: #{tpu_custom_call.1} parent=11 // pred_check_branch
          %275 = sbr.rel (%p273) target = $region40
        $region39: #{tpu_custom_call.1} parent=11 // pred_region
          _
        $region40: #{tpu_custom_call.1} parent=11 // pred_fallthru
          _
        // Predicated region
        $region41: #{tpu_custom_call.1} parent=11 // pred_check
          %p276 = pneg %p214
        $region42: #{tpu_custom_call.1} parent=11 // pred_check_branch
          %278 = sbr.rel (%p276) target = $region44
        $region43: #{tpu_custom_call.1} parent=11 // pred_region
          _
        $region44: #{tpu_custom_call.1} parent=11 // pred_fallthru
          _
      $region12: #{tpu_custom_call.1} parent=5 // pred_fallthru
        _
      %p279 = scmp.lt.s32.totalorder %s20, 2
      // Predicated region
      $region45: #{tpu_custom_call.1} parent=5 // pred_check
        %p280 = pneg %p279
      $region46: #{tpu_custom_call.1} parent=5 // pred_check_branch
        %282 = sbr.rel (%p280) target = $region48
      $region47: #{tpu_custom_call.1} parent=5 // pred_region
        // Predicated region
        $region49: #{tpu_custom_call.1} parent=47 // pred_check
          %p283 = pneg %p40
        $region50: #{tpu_custom_call.1} parent=47 // pred_check_branch
          %285 = sbr.rel (%p283) target = $region52
        $region51: #{tpu_custom_call.1} parent=47 // pred_region
          %p286 = scmp.lt.s32.totalorder %s20, 1
          %s287 = scalar_select %p286, %s20, 1
          %s288 = smul.addr %s287, 2
          %s289 = scalar_lea.vmem %s0, %s288
        $region52: #{tpu_custom_call.1} parent=47 // pred_fallthru
          _
      $region48: #{tpu_custom_call.1} parent=5 // pred_fallthru
        _
      %p290 = scmp.le.s32.totalorder 1, %s20
      %p291 = scmp.lt.s32.totalorder %s20, 3
      %p292 = pnand %p290, %p291
      %p293 = pneg %p292
      // Predicated region
      $region53: #{tpu_custom_call.1} parent=5 // pred_check
        _
      $region54: #{tpu_custom_call.1} parent=5 // pred_check_branch
        %295 = sbr.rel (%p292) target = $region56
      $region55: #{tpu_custom_call.1} parent=5 // pred_region
        %s296 = ssub.s32 %s20, 1
        %p297 = scmp.lt.s32.totalorder %s25, 1
        %s298 = scalar_select %p297, %s25, 1
        %s299 = smul.addr %s298, 2
        %s300 = scalar_lea.vmem %s0, %s299
        %p301 = pneg %p46
        %p302 = pneg %p43
        %p303 = pneg %p67
        %p304 = pneg %p64
        %p305 = pneg %p88
        %p306 = pneg %p85
        %p307 = pneg %p109
        %p308 = pneg %p106
        %p309 = pneg %p130
        %p310 = pneg %p127
        %p311 = pneg %p151
        %p312 = pneg %p148
        %p313 = pneg %p172
        %p314 = pneg %p169
        %p315 = pneg %p193
        %p316 = pneg %p190
        %p317 = pneg %p214
        %p318 = pneg %p211
        %p319 = pneg %p240
        %p320 = pneg %p237
        %s321 = sand.u32 %s227, 1
        %s322 = scalar_lea.sflag [#allocation4], %s321
        %s323 = sand.u32 %s227, 1
        %s324 = scalar_lea.vmem [#allocation3], %s323
        %p325 = scmp.lt.s32.totalorder %s25, 1
        %s326 = scalar_select %p325, %s25, 1
        %s327 = smul.addr %s326, 2
        %s328 = scalar_lea.vmem %s0, %s327
        %v329 = vld [vmem:[%s328] sm:$0x3]
        %v330 = vld [vmem:[%s1] sm:$0xff]
        %v331 = vld [vmem:[%s1 + $0x8] sm:$0xff]
        %v332 = vld [vmem:[%s1 + $0x10] sm:$0xff]
        %v333 = vld [vmem:[%s1 + $0x18] sm:$0xff]
        %335 = vset.pattern.permute.xlu0 0
        %336 = vperm.xlu0 %335, %v330
        %v337 = vpop.permute.xlu0 %336
        %340 = vset.pattern.permute.xlu0 0
        %341 = vperm.xlu0 %340, %v331
        %v342 = vpop.permute.xlu0 %341
        %345 = vset.pattern.permute.xlu0 0
        %346 = vperm.xlu0 %345, %v332
        %v347 = vpop.permute.xlu0 %346
        %350 = vset.pattern.permute.xlu0 0
        %351 = vperm.xlu0 %350, %v333
        %v352 = vpop.permute.xlu0 %351
        %v354 = vlaneseq
        %v355 = vshrl.u32 %v354, 7
        %v356 = vsub.s32 0, %v355
        %v357 = vrot.slane %v329, %v356
        %v358 = vmul.f32 %v337, %v357
        %v359 = vmul.f32 %v342, %v357
        %v360 = vmul.f32 %v347, %v357
        %v361 = vmul.f32 %v352, %v357
        %362 = vset.pattern.permute.xlu0 1
        %363 = vperm.xlu0 %362, %v330
        %v364 = vpop.permute.xlu0 %363
        %366 = vset.pattern.permute.xlu0 1
        %367 = vperm.xlu0 %366, %v331
        %v368 = vpop.permute.xlu0 %367
        %370 = vset.pattern.permute.xlu0 1
        %371 = vperm.xlu0 %370, %v332
        %v372 = vpop.permute.xlu0 %371
        %374 = vset.pattern.permute.xlu0 1
        %375 = vperm.xlu0 %374, %v333
        %v376 = vpop.permute.xlu0 %375
        %v378 = vlaneseq
        %v379 = vshrl.u32 %v378, 7
        %v380 = vsub.s32 1, %v379
        %v381 = vrot.slane %v329, %v380
        %v382 = vmul.f32 %v364, %v381
        %v383 = vmul.f32 %v368, %v381
        %v384 = vmul.f32 %v372, %v381
        %v385 = vmul.f32 %v376, %v381
        %v386 = vadd.f32 %v358, %v382
        %v387 = vadd.f32 %v359, %v383
        %v388 = vadd.f32 %v360, %v384
        %v389 = vadd.f32 %v361, %v385
        %v390 = vld [vmem:[%s2] sm:$0xff]
        %v391 = vld [vmem:[%s2 + $0x8] sm:$0xff]
        %v392 = vld [vmem:[%s2 + $0x10] sm:$0xff]
        %v393 = vld [vmem:[%s2 + $0x18] sm:$0xff]
        %395 = vset.pattern.permute.xlu0 0
        %396 = vperm.xlu0 %395, %v390
        %v397 = vpop.permute.xlu0 %396
        %400 = vset.pattern.permute.xlu0 0
        %401 = vperm.xlu0 %400, %v391
        %v402 = vpop.permute.xlu0 %401
        %405 = vset.pattern.permute.xlu0 0
        %406 = vperm.xlu0 %405, %v392
        %v407 = vpop.permute.xlu0 %406
        %410 = vset.pattern.permute.xlu0 0
        %411 = vperm.xlu0 %410, %v393
        %v412 = vpop.permute.xlu0 %411
        %v414 = vadd.f32 %v386, %v397
        %v415 = vadd.f32 %v387, %v402
        %v416 = vadd.f32 %v388, %v407
        %v417 = vadd.f32 %v389, %v412
        %v418 = vmul.f32 %v414, 0.5
        %v419 = vmul.f32 %v415, 0.5
        %v420 = vmul.f32 %v416, 0.5
        %v421 = vmul.f32 %v417, 0.5
        %v422 = vtanh.pop %v418
        %v423 = vtanh.pop %v419
        %v424 = vtanh.pop %v420
        %v425 = vtanh.pop %v421
        %v426 = vmul.f32 %v422, 0.5
        %v427 = vmul.f32 %v423, 0.5
        %v428 = vmul.f32 %v424, 0.5
        %v429 = vmul.f32 %v425, 0.5
        %v430 = vadd.f32 %v426, 0.5
        %v431 = vadd.f32 %v427, 0.5
        %v432 = vadd.f32 %v428, 0.5
        %v433 = vadd.f32 %v429, 0.5
        %v434 = vld [vmem:[%s3] sm:$0xff]
        %v435 = vld [vmem:[%s3 + $0x8] sm:$0xff]
        %v436 = vld [vmem:[%s3 + $0x10] sm:$0xff]
        %v437 = vld [vmem:[%s3 + $0x18] sm:$0xff]
        %v438 = vld [vmem:[%s4] sm:$0xff]
        %v439 = vld [vmem:[%s4 + $0x8] sm:$0xff]
        %v440 = vld [vmem:[%s4 + $0x10] sm:$0xff]
        %v441 = vld [vmem:[%s4 + $0x18] sm:$0xff]
        %443 = vset.pattern.permute.xlu0 0
        %444 = vperm.xlu0 %443, %v438
        %v445 = vpop.permute.xlu0 %444
        %448 = vset.pattern.permute.xlu0 0
        %449 = vperm.xlu0 %448, %v439
        %v450 = vpop.permute.xlu0 %449
        %453 = vset.pattern.permute.xlu0 0
        %454 = vperm.xlu0 %453, %v440
        %v455 = vpop.permute.xlu0 %454
        %458 = vset.pattern.permute.xlu0 0
        %459 = vperm.xlu0 %458, %v441
        %v460 = vpop.permute.xlu0 %459
        %vm462 = vcmask 261120
        %v464 = vsel %vm462, %v434, 0
        %v467 = vsel %vm462, %v435, 0
        %v470 = vsel %vm462, %v436, 0
        %v473 = vsel %vm462, %v437, 0
        %475 = vmatprep.subr.mxu0 0.0
        %476 = vmatpush1.msra.mxu0 %v430
        %477 = vmatprep.subr.mxu0 0.0
        %478 = vmatpush1.msra.mxu0 %v431
        %479 = vmatprep.subr.mxu0 0.0
        %480 = vmatpush1.msra.mxu0 %v432
        %481 = vmatprep.subr.mxu0 0.0
        %482 = vmatpush1.msra.mxu0 %v433
        %483 = vmatprep.subr.mxu0 0.0
        %484 = vmatpush1.msra.mxu0 0.0
        %485 = vmatprep.subr.mxu0 0.0
        %486 = vmatpush1.msra.mxu0 0.0
        %487 = vmatprep.subr.mxu0 0.0
        %488 = vmatpush1.msra.mxu0 0.0
        %489 = vmatprep.subr.mxu0 0.0
        %490 = vmatpush1.msra.mxu0 0.0
        %491 = vmatprep.subr.mxu0 0.0
        %492 = vmatpush1.msra.mxu0 0.0
        %493 = vmatprep.subr.mxu0 0.0
        %494 = vmatpush1.msra.mxu0 0.0
        %495 = vmatprep.subr.mxu0 0.0
        %496 = vmatpush1.msra.mxu0 0.0
        %497 = vmatprep.subr.mxu0 0.0
        %498 = vmatpush1.msra.mxu0 0.0
        %499 = vmatprep.subr.mxu0 0.0
        %500 = vmatpush1.msra.mxu0 0.0
        %501 = vmatprep.subr.mxu0 0.0
        %502 = vmatpush1.msra.mxu0 0.0
        %503 = vmatprep.subr.mxu0 0.0
        %504 = vmatpush1.msra.mxu0 0.0
        %505 = vmatprep.subr.mxu0 0.0
        %506 = vmatpush1.msra.mxu0 0.0
        %507 = vmatprep.subr.mxu0 0.0
        %508 = vmatpush1.msra.mxu0 0.0
        %509 = vmatprep.subr.mxu0 0.0
        %510 = vmatpush1.msra.mxu0 0.0
        %511 = vmatprep.subr.mxu0 0.0
        %512 = vmatpush1.msra.mxu0 0.0
        %513 = vmatprep.subr.mxu0 0.0
        %514 = vmatpush1.msra.mxu0 0.0
        %515 = vmatprep.subr.mxu0 0.0
        %516 = vmatpush1.msra.mxu0 0.0
        %517 = vmatprep.subr.mxu0 0.0
        %518 = vmatpush1.msra.mxu0 0.0
        %519 = vmatprep.subr.mxu0 0.0
        %520 = vmatpush1.msra.mxu0 0.0
        %521 = vmatprep.subr.mxu0 0.0
        %522 = vmatpush1.msra.mxu0 0.0
        %523 = vmatprep.subr.mxu0 0.0
        %524 = vmatpush1.msra.mxu0 0.0
        %525 = vmatprep.subr.mxu0 0.0
        %526 = vmatpush1.msra.mxu0 0.0
        %527 = vmatprep.subr.mxu0 0.0
        %528 = vmatpush1.msra.mxu0 0.0
        %529 = vmatprep.subr.mxu0 0.0
        %530 = vmatpush1.msra.mxu0 0.0
        %531 = vmatprep.subr.mxu0 0.0
        %532 = vmatpush1.msra.mxu0 0.0
        %533 = vmatprep.subr.mxu0 0.0
        %534 = vmatpush1.msra.mxu0 0.0
        %535 = vmatprep.subr.mxu0 0.0
        %536 = vmatpush1.msra.mxu0 0.0
        %537 = vmatprep.subr.mxu0 0.0
        %538 = vmatpush1.msra.mxu0 0.0
        %539 = vmatprep.mubr.f32.mxu0 0.0
        %540 = vmatmul.mubr.f32.gmra.mrb[0].mxu0 %v464
        %v541 = vpop.f32.mrb[0].mxu0
        %v542 = vadd.f32 %v445, %v541
        %v543 = vpop.f32.mrb[0].mxu0
        %544 = vmatprep.mubr.f32.mxu0 0.0
        %545 = vmatmul.mubr.f32.gmra.mrb[0].mxu0 %v467
        %v546 = vpop.f32.mrb[0].mxu0
        %v547 = vadd.f32 %v450, %v546
        %v548 = vpop.f32.mrb[0].mxu0
        %549 = vmatprep.mubr.f32.mxu0 0.0
        %550 = vmatmul.mubr.f32.gmra.mrb[0].mxu0 %v470
        %v551 = vpop.f32.mrb[0].mxu0
        %v552 = vadd.f32 %v455, %v551
        %v553 = vpop.f32.mrb[0].mxu0
        %554 = vmatprep.mubr.f32.mxu0 0.0
        %555 = vmatmul.mubr.f32.gmra.mrb[0].mxu0 %v473
        %v556 = vpop.f32.mrb[0].mxu0
        %v557 = vadd.f32 %v460, %v556
        %v558 = vpop.f32.mrb[0].mxu0
        %559 = vdwg.mxu0
        %v560 = vmul.f32 %v542, 0.5
        %v561 = vmul.f32 %v547, 0.5
        %v562 = vmul.f32 %v552, 0.5
        %v563 = vmul.f32 %v557, 0.5
        %v564 = vtanh.pop %v560
        %v565 = vtanh.pop %v561
        %v566 = vtanh.pop %v562
        %v567 = vtanh.pop %v563
        %v568 = vmul.f32 %v564, 0.5
        %v569 = vmul.f32 %v565, 0.5
        %v570 = vmul.f32 %v566, 0.5
        %v571 = vmul.f32 %v567, 0.5
        %v572 = vadd.f32 %v568, 0.5
        %v573 = vadd.f32 %v569, 0.5
        %v574 = vadd.f32 %v570, 0.5
        %v575 = vadd.f32 %v571, 0.5
        %v576 = vld [vmem:[%s5] sm:$0xff]
        %v577 = vld [vmem:[%s5 + $0x8] sm:$0xff]
        %v578 = vld [vmem:[%s5 + $0x10] sm:$0xff]
        %v579 = vld [vmem:[%s5 + $0x18] sm:$0xff]
        %v580 = vld [vmem:[%s6] sm:$0xff]
        %v581 = vld [vmem:[%s6 + $0x8] sm:$0xff]
        %v582 = vld [vmem:[%s6 + $0x10] sm:$0xff]
        %v583 = vld [vmem:[%s6 + $0x18] sm:$0xff]
        %585 = vset.pattern.permute.xlu0 0
        %586 = vperm.xlu0 %585, %v580
        %v587 = vpop.permute.xlu0 %586
        %590 = vset.pattern.permute.xlu0 0
        %591 = vperm.xlu0 %590, %v581
        %v592 = vpop.permute.xlu0 %591
        %595 = vset.pattern.permute.xlu0 0
        %596 = vperm.xlu0 %595, %v582
        %v597 = vpop.permute.xlu0 %596
        %600 = vset.pattern.permute.xlu0 0
        %601 = vperm.xlu0 %600, %v583
        %v602 = vpop.permute.xlu0 %601
        %v605 = vsel %vm462, %v576, 0
        %v608 = vsel %vm462, %v577, 0
        %v611 = vsel %vm462, %v578, 0
        %v614 = vsel %vm462, %v579, 0
        %616 = vmatprep.subr.mxu0 0.0
        %617 = vmatpush1.msra.mxu0 %v572
        %618 = vmatprep.subr.mxu0 0.0
        %619 = vmatpush1.msra.mxu0 %v573
        %620 = vmatprep.subr.mxu0 0.0
        %621 = vmatpush1.msra.mxu0 %v574
        %622 = vmatprep.subr.mxu0 0.0
        %623 = vmatpush1.msra.mxu0 %v575
        %624 = vmatprep.subr.mxu0 0.0
        %625 = vmatpush1.msra.mxu0 0.0
        %626 = vmatprep.subr.mxu0 0.0
        %627 = vmatpush1.msra.mxu0 0.0
        %628 = vmatprep.subr.mxu0 0.0
        %629 = vmatpush1.msra.mxu0 0.0
        %630 = vmatprep.subr.mxu0 0.0
        %631 = vmatpush1.msra.mxu0 0.0
        %632 = vmatprep.subr.mxu0 0.0
        %633 = vmatpush1.msra.mxu0 0.0
        %634 = vmatprep.subr.mxu0 0.0
        %635 = vmatpush1.msra.mxu0 0.0
        %636 = vmatprep.subr.mxu0 0.0
        %637 = vmatpush1.msra.mxu0 0.0
        %638 = vmatprep.subr.mxu0 0.0
        %639 = vmatpush1.msra.mxu0 0.0
        %640 = vmatprep.subr.mxu0 0.0
        %641 = vmatpush1.msra.mxu0 0.0
        %642 = vmatprep.subr.mxu0 0.0
        %643 = vmatpush1.msra.mxu0 0.0
        %644 = vmatprep.subr.mxu0 0.0
        %645 = vmatpush1.msra.mxu0 0.0
        %646 = vmatprep.subr.mxu0 0.0
        %647 = vmatpush1.msra.mxu0 0.0
        %648 = vmatprep.subr.mxu0 0.0
        %649 = vmatpush1.msra.mxu0 0.0
        %650 = vmatprep.subr.mxu0 0.0
        %651 = vmatpush1.msra.mxu0 0.0
        %652 = vmatprep.subr.mxu0 0.0
        %653 = vmatpush1.msra.mxu0 0.0
        %654 = vmatprep.subr.mxu0 0.0
        %655 = vmatpush1.msra.mxu0 0.0
        %656 = vmatprep.subr.mxu0 0.0
        %657 = vmatpush1.msra.mxu0 0.0
        %658 = vmatprep.subr.mxu0 0.0
        %659 = vmatpush1.msra.mxu0 0.0
        %660 = vmatprep.subr.mxu0 0.0
        %661 = vmatpush1.msra.mxu0 0.0
        %662 = vmatprep.subr.mxu0 0.0
        %663 = vmatpush1.msra.mxu0 0.0
        %664 = vmatprep.subr.mxu0 0.0
        %665 = vmatpush1.msra.mxu0 0.0
        %666 = vmatprep.subr.mxu0 0.0
        %667 = vmatpush1.msra.mxu0 0.0
        %668 = vmatprep.subr.mxu0 0.0
        %669 = vmatpush1.msra.mxu0 0.0
        %670 = vmatprep.subr.mxu0 0.0
        %671 = vmatpush1.msra.mxu0 0.0
        %672 = vmatprep.subr.mxu0 0.0
        %673 = vmatpush1.msra.mxu0 0.0
        %674 = vmatprep.subr.mxu0 0.0
        %675 = vmatpush1.msra.mxu0 0.0
        %676 = vmatprep.subr.mxu0 0.0
        %677 = vmatpush1.msra.mxu0 0.0
        %678 = vmatprep.subr.mxu0 0.0
        %679 = vmatpush1.msra.mxu0 0.0
        %680 = vmatprep.mubr.f32.mxu0 0.0
        %681 = vmatmul.mubr.f32.gmra.mrb[0].mxu0 %v605
        %v682 = vpop.f32.mrb[0].mxu0
        %v683 = vadd.f32 %v587, %v682
        %v684 = vpop.f32.mrb[0].mxu0
        %685 = vmatprep.mubr.f32.mxu0 0.0
        %686 = vmatmul.mubr.f32.gmra.mrb[0].mxu0 %v608
        %v687 = vpop.f32.mrb[0].mxu0
        %v688 = vadd.f32 %v592, %v687
        %v689 = vpop.f32.mrb[0].mxu0
        %690 = vmatprep.mubr.f32.mxu0 0.0
        %691 = vmatmul.mubr.f32.gmra.mrb[0].mxu0 %v611
        %v692 = vpop.f32.mrb[0].mxu0
        %v693 = vadd.f32 %v597, %v692
        %v694 = vpop.f32.mrb[0].mxu0
        %695 = vmatprep.mubr.f32.mxu0 0.0
        %696 = vmatmul.mubr.f32.gmra.mrb[0].mxu0 %v614
        %v697 = vpop.f32.mrb[0].mxu0
        %v698 = vadd.f32 %v602, %v697
        %v699 = vpop.f32.mrb[0].mxu0
        %700 = vdwg.mxu0
        %v701 = vmul.f32 %v683, 0.5
        %v702 = vmul.f32 %v688, 0.5
        %v703 = vmul.f32 %v693, 0.5
        %v704 = vmul.f32 %v698, 0.5
        %v705 = vtanh.pop %v701
        %v706 = vtanh.pop %v702
        %v707 = vtanh.pop %v703
        %v708 = vtanh.pop %v704
        %v709 = vmul.f32 %v705, 0.5
        %v710 = vmul.f32 %v706, 0.5
        %v711 = vmul.f32 %v707, 0.5
        %v712 = vmul.f32 %v708, 0.5
        %v713 = vadd.f32 %v709, 0.5
        %v714 = vadd.f32 %v710, 0.5
        %v715 = vadd.f32 %v711, 0.5
        %v716 = vadd.f32 %v712, 0.5
        %v717 = vld [vmem:[%s7] sm:$0xff]
        %v718 = vld [vmem:[%s7 + $0x8] sm:$0xff]
        %v719 = vld [vmem:[%s7 + $0x10] sm:$0xff]
        %v720 = vld [vmem:[%s7 + $0x18] sm:$0xff]
        %722 = vset.pattern.permute.xlu0 0
        %723 = vperm.xlu0 %722, %v717
        %v724 = vpop.permute.xlu0 %723
        %727 = vset.pattern.permute.xlu0 0
        %728 = vperm.xlu0 %727, %v718
        %v729 = vpop.permute.xlu0 %728
        %732 = vset.pattern.permute.xlu0 0
        %733 = vperm.xlu0 %732, %v719
        %v734 = vpop.permute.xlu0 %733
        %737 = vset.pattern.permute.xlu0 0
        %738 = vperm.xlu0 %737, %v720
        %v739 = vpop.permute.xlu0 %738
        %v741 = vmul.f32 %v724, %v713
        %v742 = vmul.f32 %v729, %v714
        %v743 = vmul.f32 %v734, %v715
        %v744 = vmul.f32 %v739, %v716
        %v745 = vadd.f32 %v741, %v742
        %v746 = vadd.f32 %v745, %v743
        %v747 = vadd.f32 %v746, %v744
        %v748 = vrot.slane %v747, 4
        %v749 = vadd.f32 %v747, %v748
        %v750 = vrot.slane %v749, 2
        %v751 = vadd.f32 %v749, %v750
        %v752 = vrot.slane %v751, 1
        %v753 = vadd.f32 %v751, %v752
        %v754 = vld [vmem:[#allocation2] sm:$0x1]
        %756 = vset.pattern.permute.xlu0 0
        %757 = vperm.xlu0 %756, %v754
        %v758 = vpop.permute.xlu0 %757
        %v760 = vlaneseq
        %v761 = vshrl.u32 %v760, 7
        %v762 = vsub.s32 0, %v761
        %v763 = vrot.slane %v758, %v762
        %v764 = vadd.f32 %v753, %v763
        %765 = vst [vmem:[%s324] sm:$0x1] %v764
        %s766 = sand.u32 %s227, 1
        %s767 = scalar_lea.sflag [#allocation4], %s766
        %s768 = sand.u32 %s227, 1
        %s769 = scalar_lea.vmem [#allocation3], %s768
        // Predicated region
        $region57: #{tpu_custom_call.1} parent=55 // pred_check
          %p770 = pneg %p237
        $region58: #{tpu_custom_call.1} parent=55 // pred_check_branch
          %772 = sbr.rel (%p770) target = $region60
        $region59: #{tpu_custom_call.1} parent=55 // pred_region
          %s774 = ssub.s32 16, 16
          %775 = vsyncadd %s767, %s774
          %s776 = smul.addr %s25, 16
          %s777 = scalar_lea.hbm %s9, %s776
          %s779 = sshll.u32 %s769, 4
          %s780 = int_to_ptr.vmem [resolvable:$true] %s779
          %782 = dma.vmem_to_hbm [thread:$0]  %s780, 16, %s777, %s767
        $region60: #{tpu_custom_call.1} parent=55 // pred_fallthru
          _
      $region56: #{tpu_custom_call.1} parent=5 // pred_fallthru
        _
      %p783 = scmp.le.s32.totalorder 2, %s20
      // Predicated region
      $region61: #{tpu_custom_call.1} parent=5 // pred_check
        %p784 = pneg %p783
      $region62: #{tpu_custom_call.1} parent=5 // pred_check_branch
        %786 = sbr.rel (%p784) target = $region64
      $region63: #{tpu_custom_call.1} parent=5 // pred_region
        %s787 = ssub.s32 %s20, 2
        // Predicated region
        $region65: #{tpu_custom_call.1} parent=63 // pred_check
          %p788 = pneg %p243
        $region66: #{tpu_custom_call.1} parent=63 // pred_check_branch
          %790 = sbr.rel (%p788) target = $region68
        $region67: #{tpu_custom_call.1} parent=63 // pred_region
          %s791 = sand.u32 %s228, 1
          %s792 = scalar_lea.sflag [#allocation4], %s791
          %s793 = sand.u32 %s228, 1
          %s794 = scalar_lea.vmem [#allocation3], %s793
          %795 = dma.done %s792, 16
        $region68: #{tpu_custom_call.1} parent=63 // pred_fallthru
          _
      $region64: #{tpu_custom_call.1} parent=5 // pred_fallthru
        _
    $region6: #{tpu_custom_call.1} parent=1 // loop_footer
      %s24 = sadd.s32 1, %s20
    $region7: #{tpu_custom_call.1} parent=1 // loop_footer_branch
      %19 = sbr.rel target = $region3
    $region8: #{tpu_custom_call.1} parent=1 // loop_exit
      _
    %796 = vsyncpa [#allocation4], 1
    %s797 = scalar_lea.sflag [#allocation4], 1
    %798 = vsyncpa %s797, 1

</llo_original>
